<compile_context>
chip_gen: v6e
topology: v6e:2x2x1
jax: 0.10.0
libtpu: 0.0.40
codegen_flags: <defaults>
</compile_context>

<pallas_src>
import jax
import jax.numpy as jnp
from jax.experimental import pallas as pl
from jax.experimental.pallas import tpu as pltpu


def discriminator_kernel(x_ref, w1_ref, b1_ref, w2_ref, b2_ref, w3_ref, b3_ref,
                         o_ref):
    # x:(TB,IN)  w1:(IN,H)  b1:(1,H)
    # w2:(H,H) [f32 or bf16]  b2:(1,H)
    # w3:(O,H)   b3:(O,1)     o:(1,O,TB)  (lane-dense: batch on the lane axis)
    x = x_ref[...]                       # already f32; no extra cast
    in_sz = w1_ref.shape[0]

    # ---- layer 1: tiny K (=2) contraction on the VPU (broadcast FMA). ----
    # Avoids an MXU pass that would be ~98% systolic-depth padding.
    h1 = b1_ref[...] + x[:, 0:1] * w1_ref[0:1, :]
    for k in range(1, in_sz):            # static, unrolled (in_sz is tiny)
        h1 = h1 + x[:, k:k + 1] * w1_ref[k:k + 1, :]
    h1 = jnp.tanh(h1)                    # (TB, H), EUP

    # ---- layer 2: the only real MXU job; (bf16 x bf16) -> f32 accumulate. ----
    h2 = jnp.dot(h1.astype(w2_ref.dtype), w2_ref[...],
                 preferred_element_type=jnp.float32)
    h2 = jnp.tanh(h2 + b2_ref[...])      # (TB, H), EUP

    # ---- layer 3: N(=1) output, produced directly lane-dense as (O, TB). ----
    # dot_general contracting the H axes of (O,H) and (TB,H)  ==  w3 @ h2.T,
    # i.e. the standard q@k^T MXU form; its cost at O=1 is negligible and the
    # result already has batch on lanes, so the store is unmasked/full-lane.
    logits = jax.lax.dot_general(
        w3_ref[...], h2,
        dimension_numbers=(((1,), (1,)), ((), ())),
        preferred_element_type=jnp.float32)          # (O, TB)
    o_ref[0] = jax.nn.sigmoid(logits + b3_ref[...]).astype(o_ref.dtype)


def _choose_tile_b(batch):
    # Whole batch in one step when small (per-step overhead dominates tiny
    # tiles); otherwise >=2 lane-aligned (multiple of 128) steps so the
    # "parallel" batch axis can be sharded across v7x's two TensorCores.
    # VMEM is a non-issue: weights ~66 KB, intermediates ~1 MB/2048 rows.
    for t in (2048, 1024, 512, 256):
        if batch % t == 0 and batch // t >= 2:
            return t
    return batch


def discriminator_forward(x, params, *, tile_b=None, use_bf16_matmul=True):
    """x: (B, input_size) float32 -> (B, output_size) float32."""
    w1, b1, w2, b2, w3, b3 = params
    B, in_sz = x.shape
    hid = w1.shape[1]
    out_sz = w3.shape[0]

    if tile_b is None:
        tile_b = _choose_tile_b(B)
    assert B % tile_b == 0, "batch must be divisible by tile_b"
    n_tiles = B // tile_b

    if use_bf16_matmul:
        # bf16-native MXU path (f32 accumulate); tanh outputs are in [-1,1]
        # so bf16 operand precision is ample.
        w2 = w2.astype(jnp.bfloat16)

    in_specs = [
        pl.BlockSpec((tile_b, in_sz), lambda i: (i, 0)),   # x tile
        pl.BlockSpec((in_sz, hid),    lambda i: (0, 0)),   # w1 (resident)
        pl.BlockSpec((1, hid),        lambda i: (0, 0)),   # b1
        pl.BlockSpec((hid, hid),      lambda i: (0, 0)),   # w2
        pl.BlockSpec((1, hid),        lambda i: (0, 0)),   # b2
        pl.BlockSpec((out_sz, hid),   lambda i: (0, 0)),   # w3
        pl.BlockSpec((out_sz, 1),     lambda i: (0, 0)),   # b3
    ]
    # Lane-dense output: (n_tiles, out, tile_b) with the batch on lanes.
    out_specs = pl.BlockSpec((1, out_sz, tile_b), lambda i: (i, 0, 0))

    out = pl.pallas_call(
        discriminator_kernel,
        out_shape=jax.ShapeDtypeStruct((n_tiles, out_sz, tile_b), jnp.float32),
        grid_spec=pltpu.PrefetchScalarGridSpec(
            num_scalar_prefetch=0,
            grid=(n_tiles,),
            in_specs=in_specs,
            out_specs=out_specs,
        ),
        compiler_params=pltpu.CompilerParams(
            dimension_semantics=("parallel",)),
    )(x, w1, b1, w2, b2, w3, b3)

    # (n_tiles, O, tile_b) -> (B, O); tiny layout fix-up outside the kernel.
    return out.transpose(0, 2, 1).reshape(B, out_sz)


def init_params(key, input_size=2, hidden_size=128, output_size=1):
    """Deterministic init mimicking nn.Linear's U(-1/sqrt(fan_in), 1/sqrt(fan_in))."""
    ks = jax.random.split(key, 6)

    def linear(kw, kb, fan_in, w_shape, b_shape):
        bound = 1.0 / (fan_in ** 0.5)
        w = jax.random.uniform(kw, w_shape, jnp.float32, -bound, bound)
        b = jax.random.uniform(kb, b_shape, jnp.float32, -bound, bound)
        return w, b

    w1, b1 = linear(ks[0], ks[1], input_size,
                    (input_size, hidden_size), (1, hidden_size))
    w2, b2 = linear(ks[2], ks[3], hidden_size,
                    (hidden_size, hidden_size), (1, hidden_size))
    w3, b3 = linear(ks[4], ks[5], hidden_size,
                    (output_size, hidden_size), (output_size, 1))
    return (w1, b1, w2, b2, w3, b3)


def reference_forward(x, params):
    w1, b1, w2, b2, w3, b3 = params
    h = jnp.tanh(x @ w1 + b1)
    h = jnp.tanh(h @ w2 + b2)
    return jax.nn.sigmoid(h @ w3.T + b3.T)


if __name__ == "__main__":
    key = jax.random.PRNGKey(0)
    k_x, k_p = jax.random.split(key)

    INPUT, HIDDEN, OUTPUT = 2, 128, 1
    params = init_params(k_p, INPUT, HIDDEN, OUTPUT)

    # 1) Tiled path: grid of 2 parallel, lane-aligned batch tiles (bf16 MXU).
    B = 512
    x = jax.random.normal(k_x, (B, INPUT), jnp.float32)
    out = jax.block_until_ready(discriminator_forward(x, params))
    ref = reference_forward(x, params)
    assert out.shape == (B, OUTPUT)
    assert jnp.allclose(out, ref, atol=1e-2, rtol=1e-3), "mismatch (bf16 path)"

    # 2) Small-batch path: whole batch in one grid step, f32 MXU, tight check.
    B2 = 16
    x2 = jax.random.normal(k_x, (B2, INPUT), jnp.float32)
    out2 = jax.block_until_ready(
        discriminator_forward(x2, params, use_bf16_matmul=False))
    ref2 = reference_forward(x2, params)
    assert out2.shape == (B2, OUTPUT)
    assert jnp.allclose(out2, ref2, atol=1e-5, rtol=1e-5), "mismatch (f32 path)"

    print("KERNEL_OK")
</pallas_src>

<mosaic_0001>
module attributes {stable_mosaic.version = 11 : i64} {
  func.func @discriminator_kernel(%arg0: i32, %arg1: memref<256x2xf32, #tpu.memory_space<vmem>>, %arg2: memref<2x128xf32, #tpu.memory_space<vmem>>, %arg3: memref<1x128xf32, #tpu.memory_space<vmem>>, %arg4: memref<128x128xbf16, #tpu.memory_space<vmem>>, %arg5: memref<1x128xf32, #tpu.memory_space<vmem>>, %arg6: memref<1x128xf32, #tpu.memory_space<vmem>>, %arg7: memref<1x1xf32, #tpu.memory_space<vmem>>, %arg8: memref<1x1x256xf32, #tpu.memory_space<vmem>>) attributes {dimension_semantics = [#tpu.dimension_semantics<parallel>], iteration_bounds = array<i64: 2>, scalar_prefetch = 0 : i64, scratch_operands = 0 : i64, tpu.core_type = #tpu.core_type<tc>, window_params = [{transform_indices = @transform_0, window_bounds = array<i64: 256, 2>}, {pipeline_mode = #tpu.pipeline_mode<synchronous>, transform_indices = @transform_1, window_bounds = array<i64: 2, 128>}, {pipeline_mode = #tpu.pipeline_mode<synchronous>, transform_indices = @transform_2, window_bounds = array<i64: 1, 128>}, {pipeline_mode = #tpu.pipeline_mode<synchronous>, transform_indices = @transform_3, window_bounds = array<i64: 128, 128>}, {pipeline_mode = #tpu.pipeline_mode<synchronous>, transform_indices = @transform_4, window_bounds = array<i64: 1, 128>}, {pipeline_mode = #tpu.pipeline_mode<synchronous>, transform_indices = @transform_5, window_bounds = array<i64: 1, 128>}, {pipeline_mode = #tpu.pipeline_mode<synchronous>, transform_indices = @transform_6, window_bounds = array<i64: 1, 1>}, {transform_indices = @transform_7, window_bounds = array<i64: 1, 1, 256>}]} {
    %c0 = arith.constant 0 : index
    %c0_0 = arith.constant 0 : index
    %0 = vector.load %arg1[%c0, %c0_0] : memref<256x2xf32, #tpu.memory_space<vmem>>, vector<256x2xf32>
    %c0_1 = arith.constant 0 : index
    %c0_2 = arith.constant 0 : index
    %1 = vector.load %arg3[%c0_1, %c0_2] : memref<1x128xf32, #tpu.memory_space<vmem>>, vector<1x128xf32>
    %2 = vector.extract_strided_slice %0 {offsets = [0, 0], sizes = [256, 1], strides = [1, 1]} : vector<256x2xf32> to vector<256x1xf32>
    %c0_3 = arith.constant 0 : index
    %c0_4 = arith.constant 0 : index
    %3 = vector.load %arg2[%c0_3, %c0_4] : memref<2x128xf32, #tpu.memory_space<vmem>>, vector<1x128xf32>
    %4 = vector.broadcast %2 : vector<256x1xf32> to vector<256x128xf32>
    %5 = vector.broadcast %3 : vector<1x128xf32> to vector<256x128xf32>
    %6 = arith.mulf %4, %5 : vector<256x128xf32>
    %7 = vector.broadcast %1 : vector<1x128xf32> to vector<256x128xf32>
    %8 = arith.addf %7, %6 : vector<256x128xf32>
    %9 = vector.extract_strided_slice %0 {offsets = [0, 1], sizes = [256, 1], strides = [1, 1]} : vector<256x2xf32> to vector<256x1xf32>
    %c1 = arith.constant 1 : index
    %c0_5 = arith.constant 0 : index
    %10 = vector.load %arg2[%c1, %c0_5] : memref<2x128xf32, #tpu.memory_space<vmem>>, vector<1x128xf32>
    %11 = vector.broadcast %9 : vector<256x1xf32> to vector<256x128xf32>
    %12 = vector.broadcast %10 : vector<1x128xf32> to vector<256x128xf32>
    %13 = arith.mulf %11, %12 : vector<256x128xf32>
    %14 = arith.addf %8, %13 : vector<256x128xf32>
    %15 = math.tanh %14 : vector<256x128xf32>
    %16 = arith.truncf %15 : vector<256x128xf32> to vector<256x128xbf16>
    %c0_6 = arith.constant 0 : index
    %c0_7 = arith.constant 0 : index
    %17 = vector.load %arg4[%c0_6, %c0_7] : memref<128x128xbf16, #tpu.memory_space<vmem>>, vector<128x128xbf16>
    %cst = arith.constant dense<0.000000e+00> : vector<256x128xf32>
    %18 = tpu.matmul %16, %17, %cst {dimension_numbers = #tpu.dot_dimension_numbers<[1], [0], [0], [1], [0, 0, 1, 1], [], []>} : vector<256x128xbf16>, vector<128x128xbf16>, vector<256x128xf32> -> vector<256x128xf32>
    %c0_8 = arith.constant 0 : index
    %c0_9 = arith.constant 0 : index
    %19 = vector.load %arg5[%c0_8, %c0_9] : memref<1x128xf32, #tpu.memory_space<vmem>>, vector<1x128xf32>
    %20 = vector.broadcast %19 : vector<1x128xf32> to vector<256x128xf32>
    %21 = arith.addf %18, %20 : vector<256x128xf32>
    %22 = math.tanh %21 : vector<256x128xf32>
    %c0_10 = arith.constant 0 : index
    %c0_11 = arith.constant 0 : index
    %23 = vector.load %arg6[%c0_10, %c0_11] : memref<1x128xf32, #tpu.memory_space<vmem>>, vector<1x128xf32>
    %cst_12 = arith.constant dense<0.000000e+00> : vector<1x256xf32>
    %24 = tpu.matmul %23, %22, %cst_12 {dimension_numbers = #tpu.dot_dimension_numbers<[1], [1], [0], [0], [0, 0, 1, 0], [], []>} : vector<1x128xf32>, vector<256x128xf32>, vector<1x256xf32> -> vector<1x256xf32>
    %c0_13 = arith.constant 0 : index
    %c0_14 = arith.constant 0 : index
    %25 = vector.load %arg7[%c0_13, %c0_14] : memref<1x1xf32, #tpu.memory_space<vmem>>, vector<1x1xf32>
    %26 = vector.broadcast %25 : vector<1x1xf32> to vector<1x256xf32>
    %27 = arith.addf %24, %26 : vector<1x256xf32>
    %28 = arith.negf %27 : vector<1x256xf32>
    %29 = math.exp %28 : vector<1x256xf32>
    %cst_15 = arith.constant 1.000000e+00 : f32
    %30 = vector.broadcast %cst_15 : f32 to vector<1x256xf32>
    %31 = arith.addf %30, %29 : vector<1x256xf32>
    %32 = arith.divf %30, %31 : vector<1x256xf32>
    %c0_16 = arith.constant 0 : index
    %c0_17 = arith.constant 0 : index
    %c0_18 = arith.constant 0 : index
    %33 = vector.load %arg8[%c0_16, %c0_17, %c0_18] : memref<1x1x256xf32, #tpu.memory_space<vmem>>, vector<1x1x256xf32>
    %34 = vector.shape_cast %33 : vector<1x1x256xf32> to vector<1x256xf32>
    %35 = vector.shape_cast %32 : vector<1x256xf32> to vector<1x1x256xf32>
    tpu.vector_store %arg8[%c0_16, %c0_17, %c0_18], %35 {strides = array<i32>} : memref<1x1x256xf32, #tpu.memory_space<vmem>>, vector<1x1x256xf32>,
    return
  }
  func.func @transform_0(%arg0: i32) -> (i32, i32) {
    %c0_i32 = arith.constant 0 : i32
    %c0_i32_0 = arith.constant 0 : i32
    return %arg0, %c0_i32 : i32, i32
  }
  func.func @transform_1(%arg0: i32) -> (i32, i32) {
    %c0_i32 = arith.constant 0 : i32
    %c0_i32_0 = arith.constant 0 : i32
    %c0_i32_1 = arith.constant 0 : i32
    return %c0_i32, %c0_i32_0 : i32, i32
  }
  func.func @transform_2(%arg0: i32) -> (i32, i32) {
    %c0_i32 = arith.constant 0 : i32
    %c0_i32_0 = arith.constant 0 : i32
    %c0_i32_1 = arith.constant 0 : i32
    return %c0_i32, %c0_i32_0 : i32, i32
  }
  func.func @transform_3(%arg0: i32) -> (i32, i32) {
    %c0_i32 = arith.constant 0 : i32
    %c0_i32_0 = arith.constant 0 : i32
    %c0_i32_1 = arith.constant 0 : i32
    return %c0_i32, %c0_i32_0 : i32, i32
  }
  func.func @transform_4(%arg0: i32) -> (i32, i32) {
    %c0_i32 = arith.constant 0 : i32
    %c0_i32_0 = arith.constant 0 : i32
    %c0_i32_1 = arith.constant 0 : i32
    return %c0_i32, %c0_i32_0 : i32, i32
  }
  func.func @transform_5(%arg0: i32) -> (i32, i32) {
    %c0_i32 = arith.constant 0 : i32
    %c0_i32_0 = arith.constant 0 : i32
    %c0_i32_1 = arith.constant 0 : i32
    return %c0_i32, %c0_i32_0 : i32, i32
  }
  func.func @transform_6(%arg0: i32) -> (i32, i32) {
    %c0_i32 = arith.constant 0 : i32
    %c0_i32_0 = arith.constant 0 : i32
    %c0_i32_1 = arith.constant 0 : i32
    return %c0_i32, %c0_i32_0 : i32, i32
  }
  func.func @transform_7(%arg0: i32) -> (i32, i32, i32) {
    %c0_i32 = arith.constant 0 : i32
    %c0_i32_0 = arith.constant 0 : i32
    %c0_i32_1 = arith.constant 0 : i32
    return %arg0, %c0_i32, %c0_i32_0 : i32, i32, i32
  }
}

</mosaic_0001>

<llo_original>
// kernel: tpu_custom_call.1
$region0: #{tpu_custom_call.1}
  #allocation0 [shape = 'u32[]', space=smem, size = 0x4, offset = 0x4, fixed_abs, tag = 'smem constant byte address 0x4 - core index']
  #allocation1 [shape = 'u32[144,128]{1,0:T(1,128)}', space=vmem, size = 0x12000, scoped, tag = 'internal scratch']
  #allocation2 [shape = 'f32[1,1]{1,0:T(1,128)S(1)}', space=vmem, size = 0x200, scoped, tag = 'scoped memory for tpu_custom_call.1']
  %s0 = inlined_call_operand.vmem [shape: f32[512,2], index: 0, kind: input, shape index: {}]
  %s1 = inlined_call_operand.vmem [shape: f32[2,128], index: 1, kind: input, shape index: {}]
  %s2 = inlined_call_operand.vmem [shape: f32[1,128], index: 2, kind: input, shape index: {}]
  %s3 = inlined_call_operand.vmem [shape: bf16[128,128], index: 3, kind: input, shape index: {}]
  %s4 = inlined_call_operand.vmem [shape: f32[1,128], index: 4, kind: input, shape index: {}]
  %s5 = inlined_call_operand.vmem [shape: f32[1,128], index: 5, kind: input, shape index: {}]
  %s6 = inlined_call_operand.<no memory space> [shape: f32[1,1], index: 6, kind: input, shape index: {}]
  %s7 = inlined_call_operand.hbm [shape: f32[2,1,256], index: 7, kind: output, shape index: {}]
  %s8 = sld [smem:[#allocation0]]
  $region61: #{tpu_custom_call.1} parent=0
    _
  %s10 = ssub.s32 1, %s8
  %s11 = scalar_select 0, %s10, %s8
  %v12 = vstv %s6
  %13 = vst [vmem:[#allocation2] sm:$0x1] %v12
  $region1: #{tpu_custom_call.1} parent=0
    #allocation3 [shape = 'u8[2048]{0}', space=vmem, size = 0x800, scoped, tag = 'output window, operand 0']
    #allocation4 [shape = 's32[2]{0}', space=sflag, size = 0x8, scoped, tag = 'scoped memory for tpu_custom_call.1']
    %14 = vsyncpa [#allocation4], 0
    %s15 = scalar_lea.sflag [#allocation4], 1
    %16 = vsyncpa %s15, 0
    loop: start=0, step=1, limit=4
    $region2: #{tpu_custom_call.1} parent=1 // loop_pre_header
      _
    $region3: #{tpu_custom_call.1} parent=1 // loop_header
      %s18 = sphi 0, %s22
      %p19 = scmp.ge.s32.totalorder %s18, 4
      %s28 = sphi 0, %s30
      %s31 = sphi 0, %s28
      %s32 = sphi 0, %s31
      %s48 = sphi 0, %s32
      %s52 = sphi 0, %s52
      %s54 = sphi 0, %s52
      %s55 = sphi 0, %s54
      %s69 = sphi 0, %s55
      %s73 = sphi 0, %s73
      %s75 = sphi 0, %s73
      %s76 = sphi 0, %s75
      %s90 = sphi 0, %s76
      %s94 = sphi 0, %s94
      %s96 = sphi 0, %s94
      %s97 = sphi 0, %s96
      %s111 = sphi 0, %s97
      %s115 = sphi 0, %s115
      %s117 = sphi 0, %s115
      %s118 = sphi 0, %s117
      %s132 = sphi 0, %s118
      %s136 = sphi 0, %s136
      %s138 = sphi 0, %s136
      %s139 = sphi 0, %s138
      %s153 = sphi 0, %s139
      %s157 = sphi 0, %s157
      %s159 = sphi 0, %s157
      %s160 = sphi 0, %s159
      %s174 = sphi 0, %s160
      %s180 = sphi 0, %s182
      %s183 = sphi 0, %s180
      %s184 = sphi 0, %s183
      %s200 = sphi 0, %s184
    $region4: #{tpu_custom_call.1} parent=1 // loop_header_branch
      %21 = sbr.rel (%p19) target = $region8
    $region5: #{tpu_custom_call.1} parent=1 // loop_body
      %s23 = ssub.s32 %s18, 1
      %s24 = ssub.s32 %s18, 2
      %s25 = sadd.s32 %s18, 1
      %s26 = ssub.s32 %s18, %s25
      %p27 = scmp.eq.s32.totalorder %s26, 0
      %s29 = sadd.s32 %s28, 1
      %s30 = scalar_select %p27, %s28, %s29
      %p33 = pneg %p27
      %p34 = scmp.eq.s32.totalorder %s18, 1
      %p35 = por %p33, %p34
      %p36 = scmp.ne.s32.totalorder %s28, %s31
      %p37 = scmp.eq.s32.totalorder %s18, 0
      %p38 = por %p36, %p37
      %p39 = scmp.ne.s32.totalorder %s28, %s31
      %p40 = scmp.eq.s32.totalorder %s23, 1
      %p41 = por %p39, %p40
      %p42 = scmp.ne.s32.totalorder %s31, %s32
      %p43 = scmp.eq.s32.totalorder %s23, 0
      %p44 = por %p42, %p43
      %p45 = scmp.ne.s32.totalorder %s31, %s32
      %p46 = scmp.eq.s32.totalorder %s24, 1
      %p47 = por %p45, %p46
      %p49 = scmp.ne.s32.totalorder %s32, %s48
      %p50 = scmp.eq.s32.totalorder %s24, 0
      %p51 = por %p49, %p50
      %s53 = sadd.s32 %s52, 1
      %p56 = scmp.eq.s32.totalorder %s18, 1
      %p57 = scmp.ne.s32.totalorder %s52, %s54
      %p58 = scmp.eq.s32.totalorder %s18, 0
      %p59 = por %p57, %p58
      %p60 = scmp.ne.s32.totalorder %s52, %s54
      %p61 = scmp.eq.s32.totalorder %s23, 1
      %p62 = por %p60, %p61
      %p63 = scmp.ne.s32.totalorder %s54, %s55
      %p64 = scmp.eq.s32.totalorder %s23, 0
      %p65 = por %p63, %p64
      %p66 = scmp.ne.s32.totalorder %s54, %s55
      %p67 = scmp.eq.s32.totalorder %s24, 1
      %p68 = por %p66, %p67
      %p70 = scmp.ne.s32.totalorder %s55, %s69
      %p71 = scmp.eq.s32.totalorder %s24, 0
      %p72 = por %p70, %p71
      %s74 = sadd.s32 %s73, 1
      %p77 = scmp.eq.s32.totalorder %s18, 1
      %p78 = scmp.ne.s32.totalorder %s73, %s75
      %p79 = scmp.eq.s32.totalorder %s18, 0
      %p80 = por %p78, %p79
      %p81 = scmp.ne.s32.totalorder %s73, %s75
      %p82 = scmp.eq.s32.totalorder %s23, 1
      %p83 = por %p81, %p82
      %p84 = scmp.ne.s32.totalorder %s75, %s76
      %p85 = scmp.eq.s32.totalorder %s23, 0
      %p86 = por %p84, %p85
      %p87 = scmp.ne.s32.totalorder %s75, %s76
      %p88 = scmp.eq.s32.totalorder %s24, 1
      %p89 = por %p87, %p88
      %p91 = scmp.ne.s32.totalorder %s76, %s90
      %p92 = scmp.eq.s32.totalorder %s24, 0
      %p93 = por %p91, %p92
      %s95 = sadd.s32 %s94, 1
      %p98 = scmp.eq.s32.totalorder %s18, 1
      %p99 = scmp.ne.s32.totalorder %s94, %s96
      %p100 = scmp.eq.s32.totalorder %s18, 0
      %p101 = por %p99, %p100
      %p102 = scmp.ne.s32.totalorder %s94, %s96
      %p103 = scmp.eq.s32.totalorder %s23, 1
      %p104 = por %p102, %p103
      %p105 = scmp.ne.s32.totalorder %s96, %s97
      %p106 = scmp.eq.s32.totalorder %s23, 0
      %p107 = por %p105, %p106
      %p108 = scmp.ne.s32.totalorder %s96, %s97
      %p109 = scmp.eq.s32.totalorder %s24, 1
      %p110 = por %p108, %p109
      %p112 = scmp.ne.s32.totalorder %s97, %s111
      %p113 = scmp.eq.s32.totalorder %s24, 0
      %p114 = por %p112, %p113
      %s116 = sadd.s32 %s115, 1
      %p119 = scmp.eq.s32.totalorder %s18, 1
      %p120 = scmp.ne.s32.totalorder %s115, %s117
      %p121 = scmp.eq.s32.totalorder %s18, 0
      %p122 = por %p120, %p121
      %p123 = scmp.ne.s32.totalorder %s115, %s117
      %p124 = scmp.eq.s32.totalorder %s23, 1
      %p125 = por %p123, %p124
      %p126 = scmp.ne.s32.totalorder %s117, %s118
      %p127 = scmp.eq.s32.totalorder %s23, 0
      %p128 = por %p126, %p127
      %p129 = scmp.ne.s32.totalorder %s117, %s118
      %p130 = scmp.eq.s32.totalorder %s24, 1
      %p131 = por %p129, %p130
      %p133 = scmp.ne.s32.totalorder %s118, %s132
      %p134 = scmp.eq.s32.totalorder %s24, 0
      %p135 = por %p133, %p134
      %s137 = sadd.s32 %s136, 1
      %p140 = scmp.eq.s32.totalorder %s18, 1
      %p141 = scmp.ne.s32.totalorder %s136, %s138
      %p142 = scmp.eq.s32.totalorder %s18, 0
      %p143 = por %p141, %p142
      %p144 = scmp.ne.s32.totalorder %s136, %s138
      %p145 = scmp.eq.s32.totalorder %s23, 1
      %p146 = por %p144, %p145
      %p147 = scmp.ne.s32.totalorder %s138, %s139
      %p148 = scmp.eq.s32.totalorder %s23, 0
      %p149 = por %p147, %p148
      %p150 = scmp.ne.s32.totalorder %s138, %s139
      %p151 = scmp.eq.s32.totalorder %s24, 1
      %p152 = por %p150, %p151
      %p154 = scmp.ne.s32.totalorder %s139, %s153
      %p155 = scmp.eq.s32.totalorder %s24, 0
      %p156 = por %p154, %p155
      %s158 = sadd.s32 %s157, 1
      %p161 = scmp.eq.s32.totalorder %s18, 1
      %p162 = scmp.ne.s32.totalorder %s157, %s159
      %p163 = scmp.eq.s32.totalorder %s18, 0
      %p164 = por %p162, %p163
      %p165 = scmp.ne.s32.totalorder %s157, %s159
      %p166 = scmp.eq.s32.totalorder %s23, 1
      %p167 = por %p165, %p166
      %p168 = scmp.ne.s32.totalorder %s159, %s160
      %p169 = scmp.eq.s32.totalorder %s23, 0
      %p170 = por %p168, %p169
      %p171 = scmp.ne.s32.totalorder %s159, %s160
      %p172 = scmp.eq.s32.totalorder %s24, 1
      %p173 = por %p171, %p172
      %p175 = scmp.ne.s32.totalorder %s160, %s174
      %p176 = scmp.eq.s32.totalorder %s24, 0
      %p177 = por %p175, %p176
      %s178 = ssub.s32 %s18, %s25
      %p179 = scmp.eq.s32.totalorder %s178, 0
      %s181 = sadd.s32 %s180, 1
      %s182 = scalar_select %p179, %s180, %s181
      %p185 = pneg %p179
      %p186 = scmp.eq.s32.totalorder %s18, 1
      %p187 = por %p185, %p186
      %p188 = scmp.ne.s32.totalorder %s180, %s183
      %p189 = scmp.eq.s32.totalorder %s18, 0
      %p190 = por %p188, %p189
      %p191 = scmp.ne.s32.totalorder %s180, %s183
      %p192 = scmp.eq.s32.totalorder %s23, 1
      %p193 = por %p191, %p192
      %p194 = scmp.ne.s32.totalorder %s183, %s184
      %p195 = scmp.eq.s32.totalorder %s23, 0
      %p196 = por %p194, %p195
      %p197 = scmp.ne.s32.totalorder %s183, %s184
      %p198 = scmp.eq.s32.totalorder %s24, 1
      %p199 = por %p197, %p198
      %p201 = scmp.ne.s32.totalorder %s184, %s200
      %p202 = scmp.eq.s32.totalorder %s24, 0
      %p203 = por %p201, %p202
      %p204 = scmp.le.s32.totalorder 1, %s18
      %p205 = scmp.lt.s32.totalorder %s18, 3
      %p206 = pnand %p204, %p205
      %p207 = pneg %p206
      // Predicated region
      $region9: #{tpu_custom_call.1} parent=5 // pred_check
        _
      $region10: #{tpu_custom_call.1} parent=5 // pred_check_branch
        %209 = sbr.rel (%p206) target = $region12
      $region11: #{tpu_custom_call.1} parent=5 // pred_region
        %s210 = ssub.s32 %s18, 1
        // Predicated region
        $region13: #{tpu_custom_call.1} parent=11 // pred_check
          %p211 = pneg %p65
        $region14: #{tpu_custom_call.1} parent=11 // pred_check_branch
          %213 = sbr.rel (%p211) target = $region16
        $region15: #{tpu_custom_call.1} parent=11 // pred_region
          _
        $region16: #{tpu_custom_call.1} parent=11 // pred_fallthru
          _
        // Predicated region
        $region17: #{tpu_custom_call.1} parent=11 // pred_check
          %p214 = pneg %p86
        $region18: #{tpu_custom_call.1} parent=11 // pred_check_branch
          %216 = sbr.rel (%p214) target = $region20
        $region19: #{tpu_custom_call.1} parent=11 // pred_region
          _
        $region20: #{tpu_custom_call.1} parent=11 // pred_fallthru
          _
        // Predicated region
        $region21: #{tpu_custom_call.1} parent=11 // pred_check
          %p217 = pneg %p107
        $region22: #{tpu_custom_call.1} parent=11 // pred_check_branch
          %219 = sbr.rel (%p217) target = $region24
        $region23: #{tpu_custom_call.1} parent=11 // pred_region
          _
        $region24: #{tpu_custom_call.1} parent=11 // pred_fallthru
          _
        // Predicated region
        $region25: #{tpu_custom_call.1} parent=11 // pred_check
          %p220 = pneg %p128
        $region26: #{tpu_custom_call.1} parent=11 // pred_check_branch
          %222 = sbr.rel (%p220) target = $region28
        $region27: #{tpu_custom_call.1} parent=11 // pred_region
          _
        $region28: #{tpu_custom_call.1} parent=11 // pred_fallthru
          _
        // Predicated region
        $region29: #{tpu_custom_call.1} parent=11 // pred_check
          %p223 = pneg %p149
        $region30: #{tpu_custom_call.1} parent=11 // pred_check_branch
          %225 = sbr.rel (%p223) target = $region32
        $region31: #{tpu_custom_call.1} parent=11 // pred_region
          _
        $region32: #{tpu_custom_call.1} parent=11 // pred_fallthru
          _
        // Predicated region
        $region33: #{tpu_custom_call.1} parent=11 // pred_check
          %p226 = pneg %p170
        $region34: #{tpu_custom_call.1} parent=11 // pred_check_branch
          %228 = sbr.rel (%p226) target = $region36
        $region35: #{tpu_custom_call.1} parent=11 // pred_region
          _
        $region36: #{tpu_custom_call.1} parent=11 // pred_fallthru
          _
      $region12: #{tpu_custom_call.1} parent=5 // pred_fallthru
        _
      %p229 = scmp.lt.s32.totalorder %s18, 2
      // Predicated region
      $region37: #{tpu_custom_call.1} parent=5 // pred_check
        %p230 = pneg %p229
      $region38: #{tpu_custom_call.1} parent=5 // pred_check_branch
        %232 = sbr.rel (%p230) target = $region40
      $region39: #{tpu_custom_call.1} parent=5 // pred_region
        // Predicated region
        $region41: #{tpu_custom_call.1} parent=39 // pred_check
          %p233 = pneg %p38
        $region42: #{tpu_custom_call.1} parent=39 // pred_check_branch
          %235 = sbr.rel (%p233) target = $region44
        $region43: #{tpu_custom_call.1} parent=39 // pred_region
          %s236 = smul.u32 32, %s18
          %p237 = scmp.lt.s32.totalorder %s236, 63
          %s238 = scalar_select %p237, %s236, 63
          %s239 = smul.addr %s238, 8
          %s240 = scalar_lea.vmem %s0, %s239
          %s241 = smul.u32 32, %s18
        $region44: #{tpu_custom_call.1} parent=39 // pred_fallthru
          _
      $region40: #{tpu_custom_call.1} parent=5 // pred_fallthru
        _
      %p242 = scmp.le.s32.totalorder 1, %s18
      %p243 = scmp.lt.s32.totalorder %s18, 3
      %p244 = pnand %p242, %p243
      %p245 = pneg %p244
      // Predicated region
      $region45: #{tpu_custom_call.1} parent=5 // pred_check
        _
      $region46: #{tpu_custom_call.1} parent=5 // pred_check_branch
        %247 = sbr.rel (%p244) target = $region48
      $region47: #{tpu_custom_call.1} parent=5 // pred_region
        %s248 = ssub.s32 %s18, 1
        %s249 = smul.u32 32, %s23
        %p250 = scmp.lt.s32.totalorder %s249, 63
        %s251 = scalar_select %p250, %s249, 63
        %s252 = smul.addr %s251, 8
        %s253 = scalar_lea.vmem %s0, %s252
        %p254 = pneg %p44
        %p255 = pneg %p41
        %p256 = pneg %p65
        %p257 = pneg %p62
        %p258 = pneg %p86
        %p259 = pneg %p83
        %p260 = pneg %p107
        %p261 = pneg %p104
        %p262 = pneg %p128
        %p263 = pneg %p125
        %p264 = pneg %p149
        %p265 = pneg %p146
        %p266 = pneg %p170
        %p267 = pneg %p167
        %p268 = pneg %p196
        %p269 = pneg %p193
        %s270 = sand.u32 %s183, 1
        %s271 = scalar_lea.sflag [#allocation4], %s270
        %s272 = sand.u32 %s183, 1
        %s273 = smul.addr %s272, 2
        %s274 = scalar_lea.vmem [#allocation3], %s273
        %s275 = smul.u32 32, %s23
        %p276 = scmp.lt.s32.totalorder %s275, 63
        %s277 = scalar_select %p276, %s275, 63
        %s278 = smul.addr %s277, 8
        %s279 = scalar_lea.vmem %s0, %s278
        %s280 = smul.u32 32, %s23
        %v282 = vld [vmem:[%s279] sm:$0xff]
        %v283 = vld [vmem:[%s279 + $0x8] sm:$0xff]
        %v284 = vld [vmem:[%s279 + $0x10] sm:$0xff]
        %v285 = vld [vmem:[%s279 + $0x18] sm:$0xff]
        %v286 = vld [vmem:[%s279 + $0x20] sm:$0xff]
        %v287 = vld [vmem:[%s279 + $0x28] sm:$0xff]
        %v288 = vld [vmem:[%s279 + $0x30] sm:$0xff]
        %v289 = vld [vmem:[%s279 + $0x38] sm:$0xff]
        %v290 = vld [vmem:[%s279 + $0x40] sm:$0xff]
        %v291 = vld [vmem:[%s279 + $0x48] sm:$0xff]
        %v292 = vld [vmem:[%s279 + $0x50] sm:$0xff]
        %v293 = vld [vmem:[%s279 + $0x58] sm:$0xff]
        %v294 = vld [vmem:[%s279 + $0x60] sm:$0xff]
        %v295 = vld [vmem:[%s279 + $0x68] sm:$0xff]
        %v296 = vld [vmem:[%s279 + $0x70] sm:$0xff]
        %v297 = vld [vmem:[%s279 + $0x78] sm:$0xff]
        %v298 = vld [vmem:[%s279 + $0x80] sm:$0xff]
        %v299 = vld [vmem:[%s279 + $0x88] sm:$0xff]
        %v300 = vld [vmem:[%s279 + $0x90] sm:$0xff]
        %v301 = vld [vmem:[%s279 + $0x98] sm:$0xff]
        %v302 = vld [vmem:[%s279 + $0xa0] sm:$0xff]
        %v303 = vld [vmem:[%s279 + $0xa8] sm:$0xff]
        %v304 = vld [vmem:[%s279 + $0xb0] sm:$0xff]
        %v305 = vld [vmem:[%s279 + $0xb8] sm:$0xff]
        %v306 = vld [vmem:[%s279 + $0xc0] sm:$0xff]
        %v307 = vld [vmem:[%s279 + $0xc8] sm:$0xff]
        %v308 = vld [vmem:[%s279 + $0xd0] sm:$0xff]
        %v309 = vld [vmem:[%s279 + $0xd8] sm:$0xff]
        %v310 = vld [vmem:[%s279 + $0xe0] sm:$0xff]
        %v311 = vld [vmem:[%s279 + $0xe8] sm:$0xff]
        %v312 = vld [vmem:[%s279 + $0xf0] sm:$0xff]
        %v313 = vld [vmem:[%s279 + $0xf8] sm:$0xff]
        %v314 = vld [vmem:[%s2] sm:$0x1]
        %v315 = vld [vmem:[%s1] sm:$0x1]
        %317 = vset.pattern.permute.xlu0 0
        %318 = vperm.xlu0 %317, %v282
        %v319 = vpop.permute.xlu0 %318
        %322 = vset.pattern.permute.xlu0 0
        %323 = vperm.xlu0 %322, %v283
        %v324 = vpop.permute.xlu0 %323
        %327 = vset.pattern.permute.xlu0 0
        %328 = vperm.xlu0 %327, %v284
        %v329 = vpop.permute.xlu0 %328
        %332 = vset.pattern.permute.xlu0 0
        %333 = vperm.xlu0 %332, %v285
        %v334 = vpop.permute.xlu0 %333
        %337 = vset.pattern.permute.xlu0 0
        %338 = vperm.xlu0 %337, %v286
        %v339 = vpop.permute.xlu0 %338
        %342 = vset.pattern.permute.xlu0 0
        %343 = vperm.xlu0 %342, %v287
        %v344 = vpop.permute.xlu0 %343
        %347 = vset.pattern.permute.xlu0 0
        %348 = vperm.xlu0 %347, %v288
        %v349 = vpop.permute.xlu0 %348
        %352 = vset.pattern.permute.xlu0 0
        %353 = vperm.xlu0 %352, %v289
        %v354 = vpop.permute.xlu0 %353
        %357 = vset.pattern.permute.xlu0 0
        %358 = vperm.xlu0 %357, %v290
        %v359 = vpop.permute.xlu0 %358
        %362 = vset.pattern.permute.xlu0 0
        %363 = vperm.xlu0 %362, %v291
        %v364 = vpop.permute.xlu0 %363
        %367 = vset.pattern.permute.xlu0 0
        %368 = vperm.xlu0 %367, %v292
        %v369 = vpop.permute.xlu0 %368
        %372 = vset.pattern.permute.xlu0 0
        %373 = vperm.xlu0 %372, %v293
        %v374 = vpop.permute.xlu0 %373
        %377 = vset.pattern.permute.xlu0 0
        %378 = vperm.xlu0 %377, %v294
        %v379 = vpop.permute.xlu0 %378
        %382 = vset.pattern.permute.xlu0 0
        %383 = vperm.xlu0 %382, %v295
        %v384 = vpop.permute.xlu0 %383
        %387 = vset.pattern.permute.xlu0 0
        %388 = vperm.xlu0 %387, %v296
        %v389 = vpop.permute.xlu0 %388
        %392 = vset.pattern.permute.xlu0 0
        %393 = vperm.xlu0 %392, %v297
        %v394 = vpop.permute.xlu0 %393
        %397 = vset.pattern.permute.xlu0 0
        %398 = vperm.xlu0 %397, %v298
        %v399 = vpop.permute.xlu0 %398
        %402 = vset.pattern.permute.xlu0 0
        %403 = vperm.xlu0 %402, %v299
        %v404 = vpop.permute.xlu0 %403
        %407 = vset.pattern.permute.xlu0 0
        %408 = vperm.xlu0 %407, %v300
        %v409 = vpop.permute.xlu0 %408
        %412 = vset.pattern.permute.xlu0 0
        %413 = vperm.xlu0 %412, %v301
        %v414 = vpop.permute.xlu0 %413
        %417 = vset.pattern.permute.xlu0 0
        %418 = vperm.xlu0 %417, %v302
        %v419 = vpop.permute.xlu0 %418
        %422 = vset.pattern.permute.xlu0 0
        %423 = vperm.xlu0 %422, %v303
        %v424 = vpop.permute.xlu0 %423
        %427 = vset.pattern.permute.xlu0 0
        %428 = vperm.xlu0 %427, %v304
        %v429 = vpop.permute.xlu0 %428
        %432 = vset.pattern.permute.xlu0 0
        %433 = vperm.xlu0 %432, %v305
        %v434 = vpop.permute.xlu0 %433
        %437 = vset.pattern.permute.xlu0 0
        %438 = vperm.xlu0 %437, %v306
        %v439 = vpop.permute.xlu0 %438
        %442 = vset.pattern.permute.xlu0 0
        %443 = vperm.xlu0 %442, %v307
        %v444 = vpop.permute.xlu0 %443
        %447 = vset.pattern.permute.xlu0 0
        %448 = vperm.xlu0 %447, %v308
        %v449 = vpop.permute.xlu0 %448
        %452 = vset.pattern.permute.xlu0 0
        %453 = vperm.xlu0 %452, %v309
        %v454 = vpop.permute.xlu0 %453
        %457 = vset.pattern.permute.xlu0 0
        %458 = vperm.xlu0 %457, %v310
        %v459 = vpop.permute.xlu0 %458
        %462 = vset.pattern.permute.xlu0 0
        %463 = vperm.xlu0 %462, %v311
        %v464 = vpop.permute.xlu0 %463
        %467 = vset.pattern.permute.xlu0 0
        %468 = vperm.xlu0 %467, %v312
        %v469 = vpop.permute.xlu0 %468
        %472 = vset.pattern.permute.xlu0 0
        %473 = vperm.xlu0 %472, %v313
        %v474 = vpop.permute.xlu0 %473
        %v476 = vlaneseq
        %v477 = vshrl.u32 %v476, 7
        %v478 = vsub.s32 0, %v477
        %v479 = vrot.slane %v315, %v478
        %v480 = vmul.f32 %v319, %v479
        %v481 = vmul.f32 %v324, %v479
        %v482 = vmul.f32 %v329, %v479
        %v483 = vmul.f32 %v334, %v479
        %v484 = vmul.f32 %v339, %v479
        %v485 = vmul.f32 %v344, %v479
        %v486 = vmul.f32 %v349, %v479
        %v487 = vmul.f32 %v354, %v479
        %v488 = vmul.f32 %v359, %v479
        %v489 = vmul.f32 %v364, %v479
        %v490 = vmul.f32 %v369, %v479
        %v491 = vmul.f32 %v374, %v479
        %v492 = vmul.f32 %v379, %v479
        %v493 = vmul.f32 %v384, %v479
        %v494 = vmul.f32 %v389, %v479
        %v495 = vmul.f32 %v394, %v479
        %v496 = vmul.f32 %v399, %v479
        %v497 = vmul.f32 %v404, %v479
        %v498 = vmul.f32 %v409, %v479
        %v499 = vmul.f32 %v414, %v479
        %v500 = vmul.f32 %v419, %v479
        %v501 = vmul.f32 %v424, %v479
        %v502 = vmul.f32 %v429, %v479
        %v503 = vmul.f32 %v434, %v479
        %v504 = vmul.f32 %v439, %v479
        %v505 = vmul.f32 %v444, %v479
        %v506 = vmul.f32 %v449, %v479
        %v507 = vmul.f32 %v454, %v479
        %v508 = vmul.f32 %v459, %v479
        %v509 = vmul.f32 %v464, %v479
        %v510 = vmul.f32 %v469, %v479
        %v511 = vmul.f32 %v474, %v479
        %v513 = vlaneseq
        %v514 = vshrl.u32 %v513, 7
        %v515 = vsub.s32 0, %v514
        %v516 = vrot.slane %v314, %v515
        %v518 = vadd.f32 %v516, %v480
        %v519 = vadd.f32 %v516, %v481
        %v520 = vadd.f32 %v516, %v482
        %v521 = vadd.f32 %v516, %v483
        %v522 = vadd.f32 %v516, %v484
        %v523 = vadd.f32 %v516, %v485
        %v524 = vadd.f32 %v516, %v486
        %v525 = vadd.f32 %v516, %v487
        %v526 = vadd.f32 %v516, %v488
        %v527 = vadd.f32 %v516, %v489
        %v528 = vadd.f32 %v516, %v490
        %v529 = vadd.f32 %v516, %v491
        %v530 = vadd.f32 %v516, %v492
        %v531 = vadd.f32 %v516, %v493
        %v532 = vadd.f32 %v516, %v494
        %v533 = vadd.f32 %v516, %v495
        %v534 = vadd.f32 %v516, %v496
        %v535 = vadd.f32 %v516, %v497
        %v536 = vadd.f32 %v516, %v498
        %v537 = vadd.f32 %v516, %v499
        %v538 = vadd.f32 %v516, %v500
        %v539 = vadd.f32 %v516, %v501
        %v540 = vadd.f32 %v516, %v502
        %v541 = vadd.f32 %v516, %v503
        %v542 = vadd.f32 %v516, %v504
        %v543 = vadd.f32 %v516, %v505
        %v544 = vadd.f32 %v516, %v506
        %v545 = vadd.f32 %v516, %v507
        %v546 = vadd.f32 %v516, %v508
        %v547 = vadd.f32 %v516, %v509
        %v548 = vadd.f32 %v516, %v510
        %v549 = vadd.f32 %v516, %v511
        %v550 = vld [vmem:[%s1 + $0x1] sm:$0x1]
        %551 = vset.pattern.permute.xlu0 1
        %552 = vperm.xlu0 %551, %v282
        %v553 = vpop.permute.xlu0 %552
        %555 = vset.pattern.permute.xlu0 1
        %556 = vperm.xlu0 %555, %v283
        %v557 = vpop.permute.xlu0 %556
        %559 = vset.pattern.permute.xlu0 1
        %560 = vperm.xlu0 %559, %v284
        %v561 = vpop.permute.xlu0 %560
        %563 = vset.pattern.permute.xlu0 1
        %564 = vperm.xlu0 %563, %v285
        %v565 = vpop.permute.xlu0 %564
        %567 = vset.pattern.permute.xlu0 1
        %568 = vperm.xlu0 %567, %v286
        %v569 = vpop.permute.xlu0 %568
        %571 = vset.pattern.permute.xlu0 1
        %572 = vperm.xlu0 %571, %v287
        %v573 = vpop.permute.xlu0 %572
        %575 = vset.pattern.permute.xlu0 1
        %576 = vperm.xlu0 %575, %v288
        %v577 = vpop.permute.xlu0 %576
        %579 = vset.pattern.permute.xlu0 1
        %580 = vperm.xlu0 %579, %v289
        %v581 = vpop.permute.xlu0 %580
        %583 = vset.pattern.permute.xlu0 1
        %584 = vperm.xlu0 %583, %v290
        %v585 = vpop.permute.xlu0 %584
        %587 = vset.pattern.permute.xlu0 1
        %588 = vperm.xlu0 %587, %v291
        %v589 = vpop.permute.xlu0 %588
        %591 = vset.pattern.permute.xlu0 1
        %592 = vperm.xlu0 %591, %v292
        %v593 = vpop.permute.xlu0 %592
        %595 = vset.pattern.permute.xlu0 1
        %596 = vperm.xlu0 %595, %v293
        %v597 = vpop.permute.xlu0 %596
        %599 = vset.pattern.permute.xlu0 1
        %600 = vperm.xlu0 %599, %v294
        %v601 = vpop.permute.xlu0 %600
        %603 = vset.pattern.permute.xlu0 1
        %604 = vperm.xlu0 %603, %v295
        %v605 = vpop.permute.xlu0 %604
        %607 = vset.pattern.permute.xlu0 1
        %608 = vperm.xlu0 %607, %v296
        %v609 = vpop.permute.xlu0 %608
        %611 = vset.pattern.permute.xlu0 1
        %612 = vperm.xlu0 %611, %v297
        %v613 = vpop.permute.xlu0 %612
        %615 = vset.pattern.permute.xlu0 1
        %616 = vperm.xlu0 %615, %v298
        %v617 = vpop.permute.xlu0 %616
        %619 = vset.pattern.permute.xlu0 1
        %620 = vperm.xlu0 %619, %v299
        %v621 = vpop.permute.xlu0 %620
        %623 = vset.pattern.permute.xlu0 1
        %624 = vperm.xlu0 %623, %v300
        %v625 = vpop.permute.xlu0 %624
        %627 = vset.pattern.permute.xlu0 1
        %628 = vperm.xlu0 %627, %v301
        %v629 = vpop.permute.xlu0 %628
        %631 = vset.pattern.permute.xlu0 1
        %632 = vperm.xlu0 %631, %v302
        %v633 = vpop.permute.xlu0 %632
        %635 = vset.pattern.permute.xlu0 1
        %636 = vperm.xlu0 %635, %v303
        %v637 = vpop.permute.xlu0 %636
        %639 = vset.pattern.permute.xlu0 1
        %640 = vperm.xlu0 %639, %v304
        %v641 = vpop.permute.xlu0 %640
        %643 = vset.pattern.permute.xlu0 1
        %644 = vperm.xlu0 %643, %v305
        %v645 = vpop.permute.xlu0 %644
        %647 = vset.pattern.permute.xlu0 1
        %648 = vperm.xlu0 %647, %v306
        %v649 = vpop.permute.xlu0 %648
        %651 = vset.pattern.permute.xlu0 1
        %652 = vperm.xlu0 %651, %v307
        %v653 = vpop.permute.xlu0 %652
        %655 = vset.pattern.permute.xlu0 1
        %656 = vperm.xlu0 %655, %v308
        %v657 = vpop.permute.xlu0 %656
        %659 = vset.pattern.permute.xlu0 1
        %660 = vperm.xlu0 %659, %v309
        %v661 = vpop.permute.xlu0 %660
        %663 = vset.pattern.permute.xlu0 1
        %664 = vperm.xlu0 %663, %v310
        %v665 = vpop.permute.xlu0 %664
        %667 = vset.pattern.permute.xlu0 1
        %668 = vperm.xlu0 %667, %v311
        %v669 = vpop.permute.xlu0 %668
        %671 = vset.pattern.permute.xlu0 1
        %672 = vperm.xlu0 %671, %v312
        %v673 = vpop.permute.xlu0 %672
        %675 = vset.pattern.permute.xlu0 1
        %676 = vperm.xlu0 %675, %v313
        %v677 = vpop.permute.xlu0 %676
        %v679 = vlaneseq
        %v680 = vshrl.u32 %v679, 7
        %v681 = vsub.s32 0, %v680
        %v682 = vrot.slane %v550, %v681
        %v683 = vmul.f32 %v553, %v682
        %v684 = vmul.f32 %v557, %v682
        %v685 = vmul.f32 %v561, %v682
        %v686 = vmul.f32 %v565, %v682
        %v687 = vmul.f32 %v569, %v682
        %v688 = vmul.f32 %v573, %v682
        %v689 = vmul.f32 %v577, %v682
        %v690 = vmul.f32 %v581, %v682
        %v691 = vmul.f32 %v585, %v682
        %v692 = vmul.f32 %v589, %v682
        %v693 = vmul.f32 %v593, %v682
        %v694 = vmul.f32 %v597, %v682
        %v695 = vmul.f32 %v601, %v682
        %v696 = vmul.f32 %v605, %v682
        %v697 = vmul.f32 %v609, %v682
        %v698 = vmul.f32 %v613, %v682
        %v699 = vmul.f32 %v617, %v682
        %v700 = vmul.f32 %v621, %v682
        %v701 = vmul.f32 %v625, %v682
        %v702 = vmul.f32 %v629, %v682
        %v703 = vmul.f32 %v633, %v682
        %v704 = vmul.f32 %v637, %v682
        %v705 = vmul.f32 %v641, %v682
        %v706 = vmul.f32 %v645, %v682
        %v707 = vmul.f32 %v649, %v682
        %v708 = vmul.f32 %v653, %v682
        %v709 = vmul.f32 %v657, %v682
        %v710 = vmul.f32 %v661, %v682
        %v711 = vmul.f32 %v665, %v682
        %v712 = vmul.f32 %v669, %v682
        %v713 = vmul.f32 %v673, %v682
        %v714 = vmul.f32 %v677, %v682
        %v715 = vadd.f32 %v518, %v683
        %v716 = vadd.f32 %v519, %v684
        %v717 = vadd.f32 %v520, %v685
        %v718 = vadd.f32 %v521, %v686
        %v719 = vadd.f32 %v522, %v687
        %v720 = vadd.f32 %v523, %v688
        %v721 = vadd.f32 %v524, %v689
        %v722 = vadd.f32 %v525, %v690
        %v723 = vadd.f32 %v526, %v691
        %v724 = vadd.f32 %v527, %v692
        %v725 = vadd.f32 %v528, %v693
        %v726 = vadd.f32 %v529, %v694
        %v727 = vadd.f32 %v530, %v695
        %v728 = vadd.f32 %v531, %v696
        %v729 = vadd.f32 %v532, %v697
        %v730 = vadd.f32 %v533, %v698
        %v731 = vadd.f32 %v534, %v699
        %v732 = vadd.f32 %v535, %v700
        %v733 = vadd.f32 %v536, %v701
        %v734 = vadd.f32 %v537, %v702
        %v735 = vadd.f32 %v538, %v703
        %v736 = vadd.f32 %v539, %v704
        %v737 = vadd.f32 %v540, %v705
        %v738 = vadd.f32 %v541, %v706
        %v739 = vadd.f32 %v542, %v707
        %v740 = vadd.f32 %v543, %v708
        %v741 = vadd.f32 %v544, %v709
        %v742 = vadd.f32 %v545, %v710
        %v743 = vadd.f32 %v546, %v711
        %v744 = vadd.f32 %v547, %v712
        %v745 = vadd.f32 %v548, %v713
        %v746 = vadd.f32 %v549, %v714
        %v747 = vtanh.pop %v715
        %v748 = vtanh.pop %v716
        %v749 = vtanh.pop %v717
        %v750 = vtanh.pop %v718
        %v751 = vtanh.pop %v719
        %v752 = vtanh.pop %v720
        %v753 = vtanh.pop %v721
        %v754 = vtanh.pop %v722
        %v755 = vtanh.pop %v723
        %v756 = vtanh.pop %v724
        %v757 = vtanh.pop %v725
        %v758 = vtanh.pop %v726
        %v759 = vtanh.pop %v727
        %v760 = vtanh.pop %v728
        %v761 = vtanh.pop %v729
        %v762 = vtanh.pop %v730
        %v763 = vtanh.pop %v731
        %v764 = vtanh.pop %v732
        %v765 = vtanh.pop %v733
        %v766 = vtanh.pop %v734
        %v767 = vtanh.pop %v735
        %v768 = vtanh.pop %v736
        %v769 = vtanh.pop %v737
        %v770 = vtanh.pop %v738
        %v771 = vtanh.pop %v739
        %v772 = vtanh.pop %v740
        %v773 = vtanh.pop %v741
        %v774 = vtanh.pop %v742
        %v775 = vtanh.pop %v743
        %v776 = vtanh.pop %v744
        %v777 = vtanh.pop %v745
        %v778 = vtanh.pop %v746
        %v779 = vpack.c.bf16 %v748, %v747
        %v780 = vpack.c.bf16 %v750, %v749
        %v781 = vpack.c.bf16 %v752, %v751
        %v782 = vpack.c.bf16 %v754, %v753
        %v783 = vpack.c.bf16 %v756, %v755
        %v784 = vpack.c.bf16 %v758, %v757
        %v785 = vpack.c.bf16 %v760, %v759
        %v786 = vpack.c.bf16 %v762, %v761
        %v787 = vpack.c.bf16 %v764, %v763
        %v788 = vpack.c.bf16 %v766, %v765
        %v789 = vpack.c.bf16 %v768, %v767
        %v790 = vpack.c.bf16 %v770, %v769
        %v791 = vpack.c.bf16 %v772, %v771
        %v792 = vpack.c.bf16 %v774, %v773
        %v793 = vpack.c.bf16 %v776, %v775
        %v794 = vpack.c.bf16 %v778, %v777
        %v795 = vld [vmem:[%s3] sm:$0xf]
        %v796 = vld [vmem:[%s3 + $0x4] sm:$0xf]
        %v797 = vld [vmem:[%s3 + $0x8] sm:$0xf]
        %v798 = vld [vmem:[%s3 + $0xc] sm:$0xf]
        %v799 = vld [vmem:[%s3 + $0x10] sm:$0xf]
        %v800 = vld [vmem:[%s3 + $0x14] sm:$0xf]
        %v801 = vld [vmem:[%s3 + $0x18] sm:$0xf]
        %v802 = vld [vmem:[%s3 + $0x1c] sm:$0xf]
        %v803 = vld [vmem:[%s3 + $0x20] sm:$0xf]
        %v804 = vld [vmem:[%s3 + $0x24] sm:$0xf]
        %v805 = vld [vmem:[%s3 + $0x28] sm:$0xf]
        %v806 = vld [vmem:[%s3 + $0x2c] sm:$0xf]
        %v807 = vld [vmem:[%s3 + $0x30] sm:$0xf]
        %v808 = vld [vmem:[%s3 + $0x34] sm:$0xf]
        %v809 = vld [vmem:[%s3 + $0x38] sm:$0xf]
        %v810 = vld [vmem:[%s3 + $0x3c] sm:$0xf]
        %v811 = vld [vmem:[%s4] sm:$0x1]
        %v813 = vlaneseq
        %v814 = vshrl.u32 %v813, 7
        %v815 = vsub.s32 0, %v814
        %v816 = vrot.slane %v811, %v815
        %v834 = vunpack.c.l.b16 %v795
        %v835 = vunpack.c.l.b16 %v796
        %v836 = vunpack.c.l.b16 %v797
        %v837 = vunpack.c.l.b16 %v798
        %v838 = vunpack.c.l.b16 %v799
        %v839 = vunpack.c.l.b16 %v800
        %v840 = vunpack.c.l.b16 %v801
        %v841 = vunpack.c.l.b16 %v802
        %v842 = vunpack.c.l.b16 %v803
        %v843 = vunpack.c.l.b16 %v804
        %v844 = vunpack.c.l.b16 %v805
        %v845 = vunpack.c.l.b16 %v806
        %v846 = vunpack.c.l.b16 %v807
        %v847 = vunpack.c.l.b16 %v808
        %v848 = vunpack.c.l.b16 %v809
        %v849 = vunpack.c.l.b16 %v810
        %v850 = vpack.c.b16 %v835, %v834
        %v851 = vpack.c.b16 %v837, %v836
        %v852 = vpack.c.b16 %v839, %v838
        %v853 = vpack.c.b16 %v841, %v840
        %v854 = vpack.c.b16 %v843, %v842
        %v855 = vpack.c.b16 %v845, %v844
        %v856 = vpack.c.b16 %v847, %v846
        %v857 = vpack.c.b16 %v849, %v848
        %866 = vmatprep.subr.bf16.mxu0 0
        %867 = vmatpush1.bf16.msra.mxu0 %v857
        %868 = vmatprep.subr.bf16.mxu0 0
        %869 = vmatpush1.bf16.msra.mxu0 %v856
        %870 = vmatprep.subr.bf16.mxu0 0
        %871 = vmatpush1.bf16.msra.mxu0 %v855
        %872 = vmatprep.subr.bf16.mxu0 0
        %873 = vmatpush1.bf16.msra.mxu0 %v854
        %874 = vmatprep.subr.bf16.mxu0 0
        %875 = vmatpush1.bf16.msra.mxu0 %v853
        %876 = vmatprep.subr.bf16.mxu0 0
        %877 = vmatpush1.bf16.msra.mxu0 %v852
        %878 = vmatprep.subr.bf16.mxu0 0
        %879 = vmatpush1.bf16.msra.mxu0 %v851
        %880 = vmatprep.subr.bf16.mxu0 0
        %881 = vmatpush1.bf16.msra.mxu0 %v850
        %882 = vmatprep.subr.bf16.mxu0 0
        %883 = vmatpush2.bf16.msra.mxu0 0
        %884 = vmatprep.subr.bf16.mxu0 0
        %885 = vmatpush2.bf16.msra.mxu0 0
        %886 = vmatprep.subr.bf16.mxu0 0
        %887 = vmatpush2.bf16.msra.mxu0 0
        %888 = vmatprep.subr.bf16.mxu0 0
        %889 = vmatpush2.bf16.msra.mxu0 0
        %890 = vmatprep.subr.bf16.mxu0 0
        %891 = vmatpush2.bf16.msra.mxu0 0
        %892 = vmatprep.subr.bf16.mxu0 0
        %893 = vmatpush2.bf16.msra.mxu0 0
        %894 = vmatprep.subr.bf16.mxu0 0
        %895 = vmatpush2.bf16.msra.mxu0 0
        %896 = vmatprep.subr.bf16.mxu0 0
        %897 = vmatpush2.bf16.msra.mxu0 0
        %898 = vmatprep.mubr.bf16.mxu0 0
        %899 = vmatmul.mubr.bf16.gmra.mxu0 %v779
        %v900 = vpop.f32.mrf.mxu0
        %v901 = vadd.f32 %v816, %v900
        %v902 = vpop.f32.mrf.mxu0
        %v903 = vpop.f32.mrf.mxu0
        %v904 = vadd.f32 %v816, %v903
        %v905 = vpop.f32.mrf.mxu0
        %906 = vmatprep.mubr.bf16.mxu0 0
        %907 = vmatmul.mubr.bf16.gmra.mxu0 %v780
        %v908 = vpop.f32.mrf.mxu0
        %v909 = vadd.f32 %v816, %v908
        %v910 = vpop.f32.mrf.mxu0
        %v911 = vpop.f32.mrf.mxu0
        %v912 = vadd.f32 %v816, %v911
        %v913 = vpop.f32.mrf.mxu0
        %914 = vmatprep.mubr.bf16.mxu0 0
        %915 = vmatmul.mubr.bf16.gmra.mxu0 %v781
        %v916 = vpop.f32.mrf.mxu0
        %v917 = vadd.f32 %v816, %v916
        %v918 = vpop.f32.mrf.mxu0
        %v919 = vpop.f32.mrf.mxu0
        %v920 = vadd.f32 %v816, %v919
        %v921 = vpop.f32.mrf.mxu0
        %922 = vmatprep.mubr.bf16.mxu0 0
        %923 = vmatmul.mubr.bf16.gmra.mxu0 %v782
        %v924 = vpop.f32.mrf.mxu0
        %v925 = vadd.f32 %v816, %v924
        %v926 = vpop.f32.mrf.mxu0
        %v927 = vpop.f32.mrf.mxu0
        %v928 = vadd.f32 %v816, %v927
        %v929 = vpop.f32.mrf.mxu0
        %930 = vmatprep.mubr.bf16.mxu0 0
        %931 = vmatmul.mubr.bf16.gmra.mxu0 %v783
        %v932 = vpop.f32.mrf.mxu0
        %v933 = vadd.f32 %v816, %v932
        %v934 = vpop.f32.mrf.mxu0
        %v935 = vpop.f32.mrf.mxu0
        %v936 = vadd.f32 %v816, %v935
        %v937 = vpop.f32.mrf.mxu0
        %938 = vmatprep.mubr.bf16.mxu0 0
        %939 = vmatmul.mubr.bf16.gmra.mxu0 %v784
        %v940 = vpop.f32.mrf.mxu0
        %v941 = vadd.f32 %v816, %v940
        %v942 = vpop.f32.mrf.mxu0
        %v943 = vpop.f32.mrf.mxu0
        %v944 = vadd.f32 %v816, %v943
        %v945 = vpop.f32.mrf.mxu0
        %946 = vmatprep.mubr.bf16.mxu0 0
        %947 = vmatmul.mubr.bf16.gmra.mxu0 %v785
        %v948 = vpop.f32.mrf.mxu0
        %v949 = vadd.f32 %v816, %v948
        %v950 = vpop.f32.mrf.mxu0
        %v951 = vpop.f32.mrf.mxu0
        %v952 = vadd.f32 %v816, %v951
        %v953 = vpop.f32.mrf.mxu0
        %954 = vmatprep.mubr.bf16.mxu0 0
        %955 = vmatmul.mubr.bf16.gmra.mxu0 %v786
        %v956 = vpop.f32.mrf.mxu0
        %v957 = vadd.f32 %v816, %v956
        %v958 = vpop.f32.mrf.mxu0
        %v959 = vpop.f32.mrf.mxu0
        %v960 = vadd.f32 %v816, %v959
        %v961 = vpop.f32.mrf.mxu0
        %962 = vmatprep.mubr.bf16.mxu0 0
        %963 = vmatmul.mubr.bf16.gmra.mxu0 %v787
        %v964 = vpop.f32.mrf.mxu0
        %v965 = vadd.f32 %v816, %v964
        %v966 = vpop.f32.mrf.mxu0
        %v967 = vpop.f32.mrf.mxu0
        %v968 = vadd.f32 %v816, %v967
        %v969 = vpop.f32.mrf.mxu0
        %970 = vmatprep.mubr.bf16.mxu0 0
        %971 = vmatmul.mubr.bf16.gmra.mxu0 %v788
        %v972 = vpop.f32.mrf.mxu0
        %v973 = vadd.f32 %v816, %v972
        %v974 = vpop.f32.mrf.mxu0
        %v975 = vpop.f32.mrf.mxu0
        %v976 = vadd.f32 %v816, %v975
        %v977 = vpop.f32.mrf.mxu0
        %978 = vmatprep.mubr.bf16.mxu0 0
        %979 = vmatmul.mubr.bf16.gmra.mxu0 %v789
        %v980 = vpop.f32.mrf.mxu0
        %v981 = vadd.f32 %v816, %v980
        %v982 = vpop.f32.mrf.mxu0
        %v983 = vpop.f32.mrf.mxu0
        %v984 = vadd.f32 %v816, %v983
        %v985 = vpop.f32.mrf.mxu0
        %986 = vmatprep.mubr.bf16.mxu0 0
        %987 = vmatmul.mubr.bf16.gmra.mxu0 %v790
        %v988 = vpop.f32.mrf.mxu0
        %v989 = vadd.f32 %v816, %v988
        %v990 = vpop.f32.mrf.mxu0
        %v991 = vpop.f32.mrf.mxu0
        %v992 = vadd.f32 %v816, %v991
        %v993 = vpop.f32.mrf.mxu0
        %994 = vmatprep.mubr.bf16.mxu0 0
        %995 = vmatmul.mubr.bf16.gmra.mxu0 %v791
        %v996 = vpop.f32.mrf.mxu0
        %v997 = vadd.f32 %v816, %v996
        %v998 = vpop.f32.mrf.mxu0
        %v999 = vpop.f32.mrf.mxu0
        %v1000 = vadd.f32 %v816, %v999
        %v1001 = vpop.f32.mrf.mxu0
        %1002 = vmatprep.mubr.bf16.mxu0 0
        %1003 = vmatmul.mubr.bf16.gmra.mxu0 %v792
        %v1004 = vpop.f32.mrf.mxu0
        %v1005 = vadd.f32 %v816, %v1004
        %v1006 = vpop.f32.mrf.mxu0
        %v1007 = vpop.f32.mrf.mxu0
        %v1008 = vadd.f32 %v816, %v1007
        %v1009 = vpop.f32.mrf.mxu0
        %1010 = vmatprep.mubr.bf16.mxu0 0
        %1011 = vmatmul.mubr.bf16.gmra.mxu0 %v793
        %v1012 = vpop.f32.mrf.mxu0
        %v1013 = vadd.f32 %v816, %v1012
        %v1014 = vpop.f32.mrf.mxu0
        %v1015 = vpop.f32.mrf.mxu0
        %v1016 = vadd.f32 %v816, %v1015
        %v1017 = vpop.f32.mrf.mxu0
        %1018 = vmatprep.mubr.bf16.mxu0 0
        %1019 = vmatmul.mubr.bf16.gmra.mxu0 %v794
        %v1020 = vpop.f32.mrf.mxu0
        %v1021 = vadd.f32 %v816, %v1020
        %v1022 = vpop.f32.mrf.mxu0
        %v1023 = vpop.f32.mrf.mxu0
        %v1024 = vadd.f32 %v816, %v1023
        %v1025 = vpop.f32.mrf.mxu0
        %1026 = vdwg.mxu0
        %v1027 = vtanh.pop %v901
        %v1028 = vtanh.pop %v904
        %v1029 = vtanh.pop %v909
        %v1030 = vtanh.pop %v912
        %v1031 = vtanh.pop %v917
        %v1032 = vtanh.pop %v920
        %v1033 = vtanh.pop %v925
        %v1034 = vtanh.pop %v928
        %v1035 = vtanh.pop %v933
        %v1036 = vtanh.pop %v936
        %v1037 = vtanh.pop %v941
        %v1038 = vtanh.pop %v944
        %v1039 = vtanh.pop %v949
        %v1040 = vtanh.pop %v952
        %v1041 = vtanh.pop %v957
        %v1042 = vtanh.pop %v960
        %v1043 = vtanh.pop %v965
        %v1044 = vtanh.pop %v968
        %v1045 = vtanh.pop %v973
        %v1046 = vtanh.pop %v976
        %v1047 = vtanh.pop %v981
        %v1048 = vtanh.pop %v984
        %v1049 = vtanh.pop %v989
        %v1050 = vtanh.pop %v992
        %v1051 = vtanh.pop %v997
        %v1052 = vtanh.pop %v1000
        %v1053 = vtanh.pop %v1005
        %v1054 = vtanh.pop %v1008
        %v1055 = vtanh.pop %v1013
        %v1056 = vtanh.pop %v1016
        %v1057 = vtanh.pop %v1021
        %v1058 = vtanh.pop %v1024
        %v1059 = vld [vmem:[%s5] sm:$0x1]
        %v1060 = vld [vmem:[#allocation2] sm:$0x1]
        %1062 = vset.pattern.permute.xlu0 0
        %1063 = vperm.xlu0 %1062, %v1060
        %v1064 = vpop.permute.xlu0 %1063
        %v1066 = vlaneseq
        %v1067 = vshrl.u32 %v1066, 7
        %v1068 = vsub.s32 0, %v1067
        %v1069 = vrot.slane %v1064, %v1068
        %1070 = vmatprep.subr.mxu0 0.0
        %1071 = vmatpush1.xpose.msra.mxu0 %v1042
        %1072 = vmatprep.subr.mxu0 0.0
        %1073 = vmatpush1.xpose.msra.mxu0 %v1041
        %1074 = vmatprep.subr.mxu0 0.0
        %1075 = vmatpush1.xpose.msra.mxu0 %v1040
        %1076 = vmatprep.subr.mxu0 0.0
        %1077 = vmatpush1.xpose.msra.mxu0 %v1039
        %1078 = vmatprep.subr.mxu0 0.0
        %1079 = vmatpush1.xpose.msra.mxu0 %v1038
        %1080 = vmatprep.subr.mxu0 0.0
        %1081 = vmatpush1.xpose.msra.mxu0 %v1037
        %1082 = vmatprep.subr.mxu0 0.0
        %1083 = vmatpush1.xpose.msra.mxu0 %v1036
        %1084 = vmatprep.subr.mxu0 0.0
        %1085 = vmatpush1.xpose.msra.mxu0 %v1035
        %1086 = vmatprep.subr.mxu0 0.0
        %1087 = vmatpush1.xpose.msra.mxu0 %v1034
        %1088 = vmatprep.subr.mxu0 0.0
        %1089 = vmatpush1.xpose.msra.mxu0 %v1033
        %1090 = vmatprep.subr.mxu0 0.0
        %1091 = vmatpush1.xpose.msra.mxu0 %v1032
        %1092 = vmatprep.subr.mxu0 0.0
        %1093 = vmatpush1.xpose.msra.mxu0 %v1031
        %1094 = vmatprep.subr.mxu0 0.0
        %1095 = vmatpush1.xpose.msra.mxu0 %v1030
        %1096 = vmatprep.subr.mxu0 0.0
        %1097 = vmatpush1.xpose.msra.mxu0 %v1029
        %1098 = vmatprep.subr.mxu0 0.0
        %1099 = vmatpush1.xpose.msra.mxu0 %v1028
        %1100 = vmatprep.subr.mxu0 0.0
        %1101 = vmatpush1.xpose.msra.mxu0 %v1027
        %1102 = vmatprep.subr.mxu0 0.0
        %1103 = vmatpush2.xpose.msra.mxu0 %v1058
        %1104 = vmatprep.subr.mxu0 0.0
        %1105 = vmatpush2.xpose.msra.mxu0 %v1057
        %1106 = vmatprep.subr.mxu0 0.0
        %1107 = vmatpush2.xpose.msra.mxu0 %v1056
        %1108 = vmatprep.subr.mxu0 0.0
        %1109 = vmatpush2.xpose.msra.mxu0 %v1055
        %1110 = vmatprep.subr.mxu0 0.0
        %1111 = vmatpush2.xpose.msra.mxu0 %v1054
        %1112 = vmatprep.subr.mxu0 0.0
        %1113 = vmatpush2.xpose.msra.mxu0 %v1053
        %1114 = vmatprep.subr.mxu0 0.0
        %1115 = vmatpush2.xpose.msra.mxu0 %v1052
        %1116 = vmatprep.subr.mxu0 0.0
        %1117 = vmatpush2.xpose.msra.mxu0 %v1051
        %1118 = vmatprep.subr.mxu0 0.0
        %1119 = vmatpush2.xpose.msra.mxu0 %v1050
        %1120 = vmatprep.subr.mxu0 0.0
        %1121 = vmatpush2.xpose.msra.mxu0 %v1049
        %1122 = vmatprep.subr.mxu0 0.0
        %1123 = vmatpush2.xpose.msra.mxu0 %v1048
        %1124 = vmatprep.subr.mxu0 0.0
        %1125 = vmatpush2.xpose.msra.mxu0 %v1047
        %1126 = vmatprep.subr.mxu0 0.0
        %1127 = vmatpush2.xpose.msra.mxu0 %v1046
        %1128 = vmatprep.subr.mxu0 0.0
        %1129 = vmatpush2.xpose.msra.mxu0 %v1045
        %1130 = vmatprep.subr.mxu0 0.0
        %1131 = vmatpush2.xpose.msra.mxu0 %v1044
        %1132 = vmatprep.subr.mxu0 0.0
        %1133 = vmatpush2.xpose.msra.mxu0 %v1043
        %1134 = vmatprep.mubr.f32.mxu0 0.0
        %1135 = vmatmul.mubr.f32.gmra.mxu0 %v1059
        %v1136 = vpop.f32.mrf.mxu0
        %v1137 = vadd.f32 %v1069, %v1136
        %v1138 = vpop.f32.mrf.mxu0
        %v1139 = vadd.f32 %v1069, %v1138
        %1140 = vdwg.mxu0
        %v1141 = vxor.u32 %v1137, 2147483648
        %v1142 = vxor.u32 %v1139, 2147483648
        %v1143 = vmul.f32 %v1141, 1.442695
        %v1144 = vpow.pop %v1143
        %v1145 = vmul.f32 %v1142, 1.442695
        %v1146 = vpow.pop %v1145
        %v1147 = vadd.f32 %v1144, 1.0
        %v1148 = vadd.f32 %v1146, 1.0
        %v1149 = vrcp.pop %v1147
        %v1150 = vmul.f32 1.0, %v1149
        %v1151 = vrcp.pop %v1148
        %v1152 = vmul.f32 1.0, %v1151
        %v1155 = vcombine.low %v1150, %v1152
        %v1157 = vunpack.c.l.s4 1966171168
        %v1158 = vunpack.c.0.s8 %v1157
        %v1159 = vlaneseq
        %v1160 = vshrl.u32 %v1159, 7
        %v1161 = vsub.s32 %v1158, %v1160
        %v1162 = vrot.slane %v1155, %v1161
        %v1164 = vunpack.c.l.s4 1966171168
        %v1165 = vunpack.c.0.s8 %v1164
        %v1166 = vlaneseq
        %v1167 = vshrl.u32 %v1166, 7
        %v1168 = vsub.s32 %v1165, %v1167
        %v1169 = vrot.slane %v1162, %v1168
        %v1171 = vlaneseq
        %vm1172 = vcmp.ge.s32.totalorder %v1171, 0
        %vm1173 = vcmp.lt.s32.totalorder %v1171, 256
        %vm1174 = vmand %vm1172, %vm1173
        %1175 = vst.msk [vmem:[%s274] sm:$0x3] %vm1174, %v1169
        %s1176 = sand.u32 %s183, 1
        %s1177 = scalar_lea.sflag [#allocation4], %s1176
        %s1178 = sand.u32 %s183, 1
        %s1179 = smul.addr %s1178, 2
        %s1180 = scalar_lea.vmem [#allocation3], %s1179
        // Predicated region
        $region49: #{tpu_custom_call.1} parent=47 // pred_check
          %p1181 = pneg %p193
        $region50: #{tpu_custom_call.1} parent=47 // pred_check_branch
          %1183 = sbr.rel (%p1181) target = $region52
        $region51: #{tpu_custom_call.1} parent=47 // pred_region
          %s1185 = ssub.s32 32, 32
          %1186 = vsyncadd %s1177, %s1185
          %s1187 = smul.addr %s23, 2
          %s1188 = smul.addr %s1187, 16
          %s1189 = scalar_lea.hbm %s7, %s1188
          %s1191 = sshll.u32 %s1180, 4
          %s1192 = int_to_ptr.vmem [resolvable:$true] %s1191
          %1194 = dma.vmem_to_hbm [thread:$0]  %s1192, 32, %s1189, %s1177
        $region52: #{tpu_custom_call.1} parent=47 // pred_fallthru
          _
      $region48: #{tpu_custom_call.1} parent=5 // pred_fallthru
        _
      %p1195 = scmp.le.s32.totalorder 2, %s18
      // Predicated region
      $region53: #{tpu_custom_call.1} parent=5 // pred_check
        %p1196 = pneg %p1195
      $region54: #{tpu_custom_call.1} parent=5 // pred_check_branch
        %1198 = sbr.rel (%p1196) target = $region56
      $region55: #{tpu_custom_call.1} parent=5 // pred_region
        %s1199 = ssub.s32 %s18, 2
        // Predicated region
        $region57: #{tpu_custom_call.1} parent=55 // pred_check
          %p1200 = pneg %p199
        $region58: #{tpu_custom_call.1} parent=55 // pred_check_branch
          %1202 = sbr.rel (%p1200) target = $region60
        $region59: #{tpu_custom_call.1} parent=55 // pred_region
          %s1203 = sand.u32 %s184, 1
          %s1204 = scalar_lea.sflag [#allocation4], %s1203
          %s1205 = sand.u32 %s184, 1
          %s1206 = smul.addr %s1205, 2
          %s1207 = scalar_lea.vmem [#allocation3], %s1206
          %1208 = dma.done %s1204, 32
        $region60: #{tpu_custom_call.1} parent=55 // pred_fallthru
          _
      $region56: #{tpu_custom_call.1} parent=5 // pred_fallthru
        _
    $region6: #{tpu_custom_call.1} parent=1 // loop_footer
      %s22 = sadd.s32 1, %s18
    $region7: #{tpu_custom_call.1} parent=1 // loop_footer_branch
      %17 = sbr.rel target = $region3
    $region8: #{tpu_custom_call.1} parent=1 // loop_exit
      _
    %1209 = vsyncpa [#allocation4], 1
    %s1210 = scalar_lea.sflag [#allocation4], 1
    %1211 = vsyncpa %s1210, 1

</llo_original>
